<compile_context>
chip_gen: v6e
topology: v6e:2x2x1
jax: 0.10.0
libtpu: 0.0.40
codegen_flags: <defaults>
</compile_context>

<pallas_src>
import functools

import jax
import jax.numpy as jnp
from jax.experimental import pallas as pl
from jax.experimental.pallas import tpu as pltpu

OBS_DIM = 16
ACT_DIM = 4
H1 = 400
H2 = 300

# Lane-aligned padded sizes (multiples of 128).
H1_P = 512   # 400 -> 512
H2_P = 384   # 300 -> 384  (trimmed from 512 per perf review: ~22% less weight DMA)
ACT_P = 128  # 4   -> 128  (lane-dense output slab)


def actor_kernel(x_ref, w1_ref, b1_ref, w2_ref, b2_ref, w3_ref, b3_ref, o_ref):
    # Whole forward fused in VMEM: 3 MXU matmuls (bf16 in, f32 acc) + f32 VPU bias/relu
    # + f32 EUP tanh.  Intermediates stored as bf16 so spills between matmuls are
    # half-width; elementwise math stays f32 (v5e VPU/EUP have no bf16).
    x = x_ref[...].astype(jnp.bfloat16)
    h1 = jnp.dot(x, w1_ref[...], preferred_element_type=jnp.float32) + b1_ref[...]
    h1 = jnp.maximum(h1, 0.0).astype(jnp.bfloat16)
    h2 = jnp.dot(h1, w2_ref[...], preferred_element_type=jnp.float32) + b2_ref[...]
    h2 = jnp.maximum(h2, 0.0).astype(jnp.bfloat16)
    out = jnp.dot(h2, w3_ref[...], preferred_element_type=jnp.float32) + b3_ref[...]
    o_ref[...] = jnp.tanh(out).astype(o_ref.dtype)


def _round_up(v, m):
    return ((v + m - 1) // m) * m


def _choose_tb(B):
    """Generation-aware batch tile.

    B <= 128 : round to 16 rows (bf16 sublane quantum) -> no 128-row filler for tiny
               RL rollout batches.
    B  > 128 : tiles up to 512 rows to amortize the ~0.35us/step overhead, but capped
               at B_pad/2 so there are always >= 2 grid tiles once B_pad >= 256 (keeps
               both v7x TensorCores busy via the "parallel" grid axis).
    """
    if B <= 128:
        return max(16, _round_up(B, 16))
    b128 = _round_up(B, 128)
    tb = min(512, max(128, ((b128 // 2) // 128) * 128))
    return tb


@functools.partial(jax.jit, static_argnames=("tb",))
def actor_forward(x, kparams, tb=None):
    """x: (B, OBS_DIM) f32.  kparams: padded/bf16 kernel params.  Returns (B, ACT_DIM) f32."""
    w1, b1, w2, b2, w3, b3 = kparams
    B = x.shape[0]
    if tb is None:
        tb = _choose_tb(B)
    n_tiles = pl.cdiv(B, tb)
    B_pad = n_tiles * tb
    if B_pad != B:
        x = jnp.pad(x, ((0, B_pad - B), (0, 0)))

    # Weights/biases: whole array resident in VMEM, constant block index across the grid
    # (never re-fetched after the first grid step).
    def const_spec(a):
        nd = a.ndim
        return pl.BlockSpec(a.shape, lambda i, _nd=nd: (0,) * _nd)

    weight_bytes = sum(int(a.size) * a.dtype.itemsize for a in (w1, b1, w2, b2, w3, b3))
    cost = pl.CostEstimate(
        flops=2 * B_pad * (OBS_DIM * H1_P + H1_P * H2_P + H2_P * ACT_P),
        transcendentals=B_pad * ACT_P,
        bytes_accessed=weight_bytes + int(x.size) * 4 + B_pad * ACT_P * 4,
    )

    out = pl.pallas_call(
        actor_kernel,
        out_shape=jax.ShapeDtypeStruct((B_pad, ACT_P), jnp.float32),
        grid=(n_tiles,),
        in_specs=[
            pl.BlockSpec((tb, OBS_DIM), lambda i: (i, 0)),   # streaming activations
            const_spec(w1), const_spec(b1),
            const_spec(w2), const_spec(b2),
            const_spec(w3), const_spec(b3),
        ],
        out_specs=pl.BlockSpec((tb, ACT_P), lambda i: (i, 0)),  # lane-dense output slab
        compiler_params=pltpu.CompilerParams(dimension_semantics=("parallel",)),
        cost_estimate=cost,
    )(x, w1, b1, w2, b2, w3, b3)
    return out[:B, :ACT_DIM]


def init_params(key):
    # Deterministic PyTorch-style init: U(-1/sqrt(fan_in), 1/sqrt(fan_in)), f32, unpadded.
    ks = jax.random.split(key, 6)

    def lin(kw, kb, fan_in, fan_out):
        bound = 1.0 / jnp.sqrt(fan_in)
        w = jax.random.uniform(kw, (fan_in, fan_out), jnp.float32, -bound, bound)
        b = jax.random.uniform(kb, (1, fan_out), jnp.float32, -bound, bound)
        return w, b

    w1, b1 = lin(ks[0], ks[1], OBS_DIM, H1)
    w2, b2 = lin(ks[2], ks[3], H1, H2)
    w3, b3 = lin(ks[4], ks[5], H2, ACT_DIM)
    return (w1, b1, w2, b2, w3, b3)


def prepare_kernel_params(params):
    # One-time padding to lane-aligned shapes + bf16 weights (zeros in padded slots keep
    # the math identical to the unpadded network).  Biases stay f32.
    w1, b1, w2, b2, w3, b3 = params

    def pad_to(a, shape):
        return jnp.pad(a, [(0, t - s) for s, t in zip(a.shape, shape)])

    return (
        pad_to(w1, (OBS_DIM, H1_P)).astype(jnp.bfloat16),
        pad_to(b1, (1, H1_P)),
        pad_to(w2, (H1_P, H2_P)).astype(jnp.bfloat16),
        pad_to(b2, (1, H2_P)),
        pad_to(w3, (H2_P, ACT_P)).astype(jnp.bfloat16),
        pad_to(b3, (1, ACT_P)),
    )


def reference_forward(x, params):
    # Pure-JAX f32 reference (matches the PyTorch module semantics).
    w1, b1, w2, b2, w3, b3 = params
    h1 = jnp.maximum(x @ w1 + b1, 0.0)
    h2 = jnp.maximum(h1 @ w2 + b2, 0.0)
    return jnp.tanh(h2 @ w3 + b3)


if __name__ == "__main__":
    key = jax.random.PRNGKey(0)
    kx, kp = jax.random.split(key)
    params = init_params(kp)
    kparams = prepare_kernel_params(params)

    # Small demo batch consistent with the module spec (tiny-batch path: tb=16, 1 tile).
    B = 2
    x = jax.random.normal(kx, (B, OBS_DIM), jnp.float32)
    out = jax.block_until_ready(actor_forward(x, kparams))
    ref = reference_forward(x, params)
    assert out.shape == (B, ACT_DIM)
    # bf16 weights / bf16 intermediates vs f32 reference -> loosened tolerance.
    assert jnp.allclose(out, ref, atol=2e-2, rtol=2e-2), float(jnp.max(jnp.abs(out - ref)))

    # Medium batch exercising multiple grid steps with tb=128 (weights stay VMEM-resident).
    B2 = 260
    x2 = jax.random.normal(jax.random.PRNGKey(1), (B2, OBS_DIM), jnp.float32)
    out2 = jax.block_until_ready(actor_forward(x2, kparams))
    ref2 = reference_forward(x2, params)
    assert out2.shape == (B2, ACT_DIM)
    assert jnp.allclose(out2, ref2, atol=2e-2, rtol=2e-2), float(jnp.max(jnp.abs(out2 - ref2)))

    # Large batch exercising the bigger-tile path (tb=256, >=2 tiles for v7x megacore).
    B3 = 600
    x3 = jax.random.normal(jax.random.PRNGKey(2), (B3, OBS_DIM), jnp.float32)
    out3 = jax.block_until_ready(actor_forward(x3, kparams))
    ref3 = reference_forward(x3, params)
    assert out3.shape == (B3, ACT_DIM)
    assert jnp.allclose(out3, ref3, atol=2e-2, rtol=2e-2), float(jnp.max(jnp.abs(out3 - ref3)))

    print("KERNEL_OK")
</pallas_src>

<mosaic_0001>
module attributes {stable_mosaic.version = 11 : i64} {
  func.func @actor_kernel(%arg0: i32, %arg1: memref<16x16xf32, #tpu.memory_space<vmem>>, %arg2: memref<16x512xbf16, #tpu.memory_space<vmem>>, %arg3: memref<1x512xf32, #tpu.memory_space<vmem>>, %arg4: memref<512x384xbf16, #tpu.memory_space<vmem>>, %arg5: memref<1x384xf32, #tpu.memory_space<vmem>>, %arg6: memref<384x128xbf16, #tpu.memory_space<vmem>>, %arg7: memref<1x128xf32, #tpu.memory_space<vmem>>, %arg8: memref<16x128xf32, #tpu.memory_space<vmem>>) attributes {dimension_semantics = [#tpu.dimension_semantics<parallel>], iteration_bounds = array<i64: 1>, scalar_prefetch = 0 : i64, scratch_operands = 0 : i64, tpu.core_type = #tpu.core_type<tc>, window_params = [{transform_indices = @transform_0, window_bounds = array<i64: 16, 16>}, {pipeline_mode = #tpu.pipeline_mode<synchronous>, transform_indices = @transform_1, window_bounds = array<i64: 16, 512>}, {pipeline_mode = #tpu.pipeline_mode<synchronous>, transform_indices = @transform_2, window_bounds = array<i64: 1, 512>}, {pipeline_mode = #tpu.pipeline_mode<synchronous>, transform_indices = @transform_3, window_bounds = array<i64: 512, 384>}, {pipeline_mode = #tpu.pipeline_mode<synchronous>, transform_indices = @transform_4, window_bounds = array<i64: 1, 384>}, {pipeline_mode = #tpu.pipeline_mode<synchronous>, transform_indices = @transform_5, window_bounds = array<i64: 384, 128>}, {pipeline_mode = #tpu.pipeline_mode<synchronous>, transform_indices = @transform_6, window_bounds = array<i64: 1, 128>}, {transform_indices = @transform_7, window_bounds = array<i64: 16, 128>}]} {
    %c0 = arith.constant 0 : index
    %c0_0 = arith.constant 0 : index
    %0 = vector.load %arg1[%c0, %c0_0] : memref<16x16xf32, #tpu.memory_space<vmem>>, vector<16x16xf32>
    %1 = arith.truncf %0 : vector<16x16xf32> to vector<16x16xbf16>
    %c0_1 = arith.constant 0 : index
    %c0_2 = arith.constant 0 : index
    %2 = vector.load %arg2[%c0_1, %c0_2] : memref<16x512xbf16, #tpu.memory_space<vmem>>, vector<16x512xbf16>
    %cst = arith.constant dense<0.000000e+00> : vector<16x512xf32>
    %3 = tpu.matmul %1, %2, %cst {dimension_numbers = #tpu.dot_dimension_numbers<[1], [0], [0], [1], [0, 0, 1, 1], [], []>} : vector<16x16xbf16>, vector<16x512xbf16>, vector<16x512xf32> -> vector<16x512xf32>
    %c0_3 = arith.constant 0 : index
    %c0_4 = arith.constant 0 : index
    %4 = vector.load %arg3[%c0_3, %c0_4] : memref<1x512xf32, #tpu.memory_space<vmem>>, vector<1x512xf32>
    %5 = vector.broadcast %4 : vector<1x512xf32> to vector<16x512xf32>
    %6 = arith.addf %3, %5 : vector<16x512xf32>
    %cst_5 = arith.constant 0.000000e+00 : f32
    %7 = vector.broadcast %cst_5 : f32 to vector<16x512xf32>
    %8 = arith.maximumf %6, %7 : vector<16x512xf32>
    %9 = arith.truncf %8 : vector<16x512xf32> to vector<16x512xbf16>
    %c0_6 = arith.constant 0 : index
    %c0_7 = arith.constant 0 : index
    %10 = vector.load %arg4[%c0_6, %c0_7] : memref<512x384xbf16, #tpu.memory_space<vmem>>, vector<512x384xbf16>
    %cst_8 = arith.constant dense<0.000000e+00> : vector<16x384xf32>
    %11 = tpu.matmul %9, %10, %cst_8 {dimension_numbers = #tpu.dot_dimension_numbers<[1], [0], [0], [1], [0, 0, 1, 1], [], []>} : vector<16x512xbf16>, vector<512x384xbf16>, vector<16x384xf32> -> vector<16x384xf32>
    %c0_9 = arith.constant 0 : index
    %c0_10 = arith.constant 0 : index
    %12 = vector.load %arg5[%c0_9, %c0_10] : memref<1x384xf32, #tpu.memory_space<vmem>>, vector<1x384xf32>
    %13 = vector.broadcast %12 : vector<1x384xf32> to vector<16x384xf32>
    %14 = arith.addf %11, %13 : vector<16x384xf32>
    %cst_11 = arith.constant 0.000000e+00 : f32
    %15 = vector.broadcast %cst_11 : f32 to vector<16x384xf32>
    %16 = arith.maximumf %14, %15 : vector<16x384xf32>
    %17 = arith.truncf %16 : vector<16x384xf32> to vector<16x384xbf16>
    %c0_12 = arith.constant 0 : index
    %c0_13 = arith.constant 0 : index
    %18 = vector.load %arg6[%c0_12, %c0_13] : memref<384x128xbf16, #tpu.memory_space<vmem>>, vector<384x128xbf16>
    %cst_14 = arith.constant dense<0.000000e+00> : vector<16x128xf32>
    %19 = tpu.matmul %17, %18, %cst_14 {dimension_numbers = #tpu.dot_dimension_numbers<[1], [0], [0], [1], [0, 0, 1, 1], [], []>} : vector<16x384xbf16>, vector<384x128xbf16>, vector<16x128xf32> -> vector<16x128xf32>
    %c0_15 = arith.constant 0 : index
    %c0_16 = arith.constant 0 : index
    %20 = vector.load %arg7[%c0_15, %c0_16] : memref<1x128xf32, #tpu.memory_space<vmem>>, vector<1x128xf32>
    %21 = vector.broadcast %20 : vector<1x128xf32> to vector<16x128xf32>
    %22 = arith.addf %19, %21 : vector<16x128xf32>
    %23 = math.tanh %22 : vector<16x128xf32>
    %c0_17 = arith.constant 0 : index
    %c0_18 = arith.constant 0 : index
    %24 = vector.load %arg8[%c0_17, %c0_18] : memref<16x128xf32, #tpu.memory_space<vmem>>, vector<16x128xf32>
    tpu.vector_store %arg8[%c0_17, %c0_18], %23 {strides = array<i32>} : memref<16x128xf32, #tpu.memory_space<vmem>>, vector<16x128xf32>,
    return
  }
  func.func @transform_0(%arg0: i32) -> (i32, i32) {
    %c0_i32 = arith.constant 0 : i32
    %c0_i32_0 = arith.constant 0 : i32
    return %arg0, %c0_i32 : i32, i32
  }
  func.func @transform_1(%arg0: i32) -> (i32, i32) {
    %c0_i32 = arith.constant 0 : i32
    %c0_i32_0 = arith.constant 0 : i32
    %c0_i32_1 = arith.constant 0 : i32
    return %c0_i32, %c0_i32_0 : i32, i32
  }
  func.func @transform_2(%arg0: i32) -> (i32, i32) {
    %c0_i32 = arith.constant 0 : i32
    %c0_i32_0 = arith.constant 0 : i32
    %c0_i32_1 = arith.constant 0 : i32
    return %c0_i32, %c0_i32_0 : i32, i32
  }
  func.func @transform_3(%arg0: i32) -> (i32, i32) {
    %c0_i32 = arith.constant 0 : i32
    %c0_i32_0 = arith.constant 0 : i32
    %c0_i32_1 = arith.constant 0 : i32
    return %c0_i32, %c0_i32_0 : i32, i32
  }
  func.func @transform_4(%arg0: i32) -> (i32, i32) {
    %c0_i32 = arith.constant 0 : i32
    %c0_i32_0 = arith.constant 0 : i32
    %c0_i32_1 = arith.constant 0 : i32
    return %c0_i32, %c0_i32_0 : i32, i32
  }
  func.func @transform_5(%arg0: i32) -> (i32, i32) {
    %c0_i32 = arith.constant 0 : i32
    %c0_i32_0 = arith.constant 0 : i32
    %c0_i32_1 = arith.constant 0 : i32
    return %c0_i32, %c0_i32_0 : i32, i32
  }
  func.func @transform_6(%arg0: i32) -> (i32, i32) {
    %c0_i32 = arith.constant 0 : i32
    %c0_i32_0 = arith.constant 0 : i32
    %c0_i32_1 = arith.constant 0 : i32
    return %c0_i32, %c0_i32_0 : i32, i32
  }
  func.func @transform_7(%arg0: i32) -> (i32, i32) {
    %c0_i32 = arith.constant 0 : i32
    %c0_i32_0 = arith.constant 0 : i32
    return %arg0, %c0_i32 : i32, i32
  }
}

</mosaic_0001>

<llo_original>
// kernel: actor_forward.1
$region0: #{actor_forward.1}
  #allocation0 [shape = 'u32[]', space=smem, size = 0x4, offset = 0x4, fixed_abs, tag = 'smem constant byte address 0x4 - core index']
  #allocation1 [shape = 'u32[144,128]{1,0:T(1,128)}', space=vmem, size = 0x12000, scoped, tag = 'internal scratch']
  %s0 = inlined_call_operand.vmem [shape: f32[16,16], index: 0, kind: input, shape index: {}]
  %s1 = inlined_call_operand.hbm [shape: bf16[16,512], index: 1, kind: input, shape index: {}]
  %s2 = inlined_call_operand.vmem [shape: f32[1,512], index: 2, kind: input, shape index: {}]
  %s3 = inlined_call_operand.hbm [shape: bf16[512,384], index: 3, kind: input, shape index: {}]
  %s4 = inlined_call_operand.vmem [shape: f32[1,384], index: 4, kind: input, shape index: {}]
  %s5 = inlined_call_operand.hbm [shape: bf16[384,128], index: 5, kind: input, shape index: {}]
  %s6 = inlined_call_operand.vmem [shape: f32[1,128], index: 6, kind: input, shape index: {}]
  %s7 = inlined_call_operand.vmem [shape: f32[16,128], index: 7, kind: output, shape index: {}]
  %s8 = sld [smem:[#allocation0]]
  $region50: #{actor_forward.1} parent=0
    _
  %s10 = ssub.s32 1, %s8
  %s11 = scalar_select 0, %s10, %s8
  $region1: #{actor_forward.1} parent=0
    #allocation2 [shape = 'u8[16384]{0}', space=vmem, size = 0x4000, scoped, tag = 'input window, operand 1, single buffered']
    #allocation3 [shape = 's32[1]{0}', space=sflag, size = 0x4, scoped, tag = 'scoped memory for actor_forward.1']
    #allocation4 [shape = 'u8[393216]{0}', space=vmem, size = 0x60000, scoped, tag = 'input window, operand 3, single buffered']
    #allocation5 [shape = 's32[1]{0}', space=sflag, size = 0x4, scoped, tag = 'scoped memory for actor_forward.1']
    #allocation6 [shape = 'u8[98304]{0}', space=vmem, size = 0x18000, scoped, tag = 'input window, operand 5, single buffered']
    %12 = vsyncpa [#allocation3], 0
    %13 = vsyncpa [#allocation5], 0
    // Predicated region
    $region2: #{actor_forward.1} parent=1 // pred_check
      _
    $region3: #{actor_forward.1} parent=1 // pred_check_branch
      %15 = sbr.rel (0) target = $region5
    $region4: #{actor_forward.1} parent=1 // pred_region
      _
    $region5: #{actor_forward.1} parent=1 // pred_fallthru
      _
    // Predicated region
    $region6: #{actor_forward.1} parent=1 // pred_check
      _
    $region7: #{actor_forward.1} parent=1 // pred_check_branch
      %17 = sbr.rel (0) target = $region9
    $region8: #{actor_forward.1} parent=1 // pred_region
      %s19 = ssub.s32 512, 512
      %20 = vsyncadd [#allocation3], %s19
      %s21 = sshll.u32 [#allocation2], 4
      %s22 = int_to_ptr.vmem [resolvable:$true] %s21
      %27 = dma.hbm_to_vmem [thread:$0]  %s1, 512, %s22, [#allocation3], 256, 256, 16
    $region9: #{actor_forward.1} parent=1 // pred_fallthru
      _
    // Predicated region
    $region10: #{actor_forward.1} parent=1 // pred_check
      _
    $region11: #{actor_forward.1} parent=1 // pred_check_branch
      %29 = sbr.rel (0) target = $region13
    $region12: #{actor_forward.1} parent=1 // pred_region
      _
    $region13: #{actor_forward.1} parent=1 // pred_fallthru
      _
    // Predicated region
    $region14: #{actor_forward.1} parent=1 // pred_check
      _
    $region15: #{actor_forward.1} parent=1 // pred_check_branch
      %31 = sbr.rel (0) target = $region17
    $region16: #{actor_forward.1} parent=1 // pred_region
      %s33 = ssub.s32 12288, 12288
      %34 = vsyncadd [#allocation5], %s33
      %s35 = sshll.u32 [#allocation4], 4
      %s36 = int_to_ptr.vmem [resolvable:$true] %s35
      %41 = dma.hbm_to_vmem [thread:$0]  %s3, 12288, %s36, [#allocation5], 192, 192, 12
    $region17: #{actor_forward.1} parent=1 // pred_fallthru
      _
    // Predicated region
    $region18: #{actor_forward.1} parent=1 // pred_check
      _
    $region19: #{actor_forward.1} parent=1 // pred_check_branch
      %43 = sbr.rel (0) target = $region21
    $region20: #{actor_forward.1} parent=1 // pred_region
      _
    $region21: #{actor_forward.1} parent=1 // pred_fallthru
      _
    // Predicated region
    $region22: #{actor_forward.1} parent=1 // pred_check
      _
    $region23: #{actor_forward.1} parent=1 // pred_check_branch
      %45 = sbr.rel (0) target = $region25
    $region24: #{actor_forward.1} parent=1 // pred_region
      %s47 = ssub.s32 3072, 3072
      %48 = vsyncadd [#allocation5], %s47
      %s49 = sshll.u32 [#allocation6], 4
      %s50 = int_to_ptr.vmem [resolvable:$true] %s49
      %55 = dma.hbm_to_vmem [thread:$0]  %s5, 3072, %s50, [#allocation5], 64, 64, 4
    $region25: #{actor_forward.1} parent=1 // pred_fallthru
      _
    // Predicated region
    $region26: #{actor_forward.1} parent=1 // pred_check
      _
    $region27: #{actor_forward.1} parent=1 // pred_check_branch
      %57 = sbr.rel (0) target = $region29
    $region28: #{actor_forward.1} parent=1 // pred_region
      _
    $region29: #{actor_forward.1} parent=1 // pred_fallthru
      _
    // Predicated region
    $region30: #{actor_forward.1} parent=1 // pred_check
      _
    $region31: #{actor_forward.1} parent=1 // pred_check_branch
      %59 = sbr.rel (0) target = $region33
    $region32: #{actor_forward.1} parent=1 // pred_region
      %60 = dma.done [#allocation3], 512
    $region33: #{actor_forward.1} parent=1 // pred_fallthru
      _
    // Predicated region
    $region34: #{actor_forward.1} parent=1 // pred_check
      _
    $region35: #{actor_forward.1} parent=1 // pred_check_branch
      %62 = sbr.rel (0) target = $region37
    $region36: #{actor_forward.1} parent=1 // pred_region
      %63 = dma.done [#allocation5], 12288
    $region37: #{actor_forward.1} parent=1 // pred_fallthru
      _
    // Predicated region
    $region38: #{actor_forward.1} parent=1 // pred_check
      _
    $region39: #{actor_forward.1} parent=1 // pred_check_branch
      %65 = sbr.rel (0) target = $region41
    $region40: #{actor_forward.1} parent=1 // pred_region
      %66 = dma.done [#allocation5], 3072
    $region41: #{actor_forward.1} parent=1 // pred_fallthru
      _
    %v68 = vld [vmem:[%s0] sm:$0xff]
    %v69 = vld [vmem:[%s0 + $0x8] sm:$0xff]
    %v70 = vpack.c.bf16 %v69, %v68
    %v71 = vld [vmem:[#allocation2] sm:$0xff]
    %v72 = vld [vmem:[#allocation2 + $0x8] sm:$0xff]
    %v73 = vld [vmem:[#allocation2 + $0x10] sm:$0xff]
    %v74 = vld [vmem:[#allocation2 + $0x18] sm:$0xff]
    %v75 = vld [vmem:[%s2] sm:$0xf]
    %v77 = vlaneseq
    %v78 = vshrl.u32 %v77, 7
    %v79 = vsub.s32 0, %v78
    %v80 = vrot.slane %v75, %v79
    %v81 = vlaneseq
    %v82 = vshrl.u32 %v81, 7
    %v83 = vsub.s32 1, %v82
    %v84 = vrot.slane %v75, %v83
    %v85 = vlaneseq
    %v86 = vshrl.u32 %v85, 7
    %v87 = vsub.s32 2, %v86
    %v88 = vrot.slane %v75, %v87
    %v89 = vlaneseq
    %v90 = vshrl.u32 %v89, 7
    %v91 = vsub.s32 3, %v90
    %v92 = vrot.slane %v75, %v91
    %v101 = vunpack.c.l.b16 %v71
    %v102 = vunpack.c.h.b16 %v71
    %v103 = vunpack.c.l.b16 %v72
    %v104 = vunpack.c.h.b16 %v72
    %v105 = vunpack.c.l.b16 %v73
    %v106 = vunpack.c.h.b16 %v73
    %v107 = vunpack.c.l.b16 %v74
    %v108 = vunpack.c.h.b16 %v74
    %v109 = vpack.c.b16 %v105, %v101
    %v110 = vpack.c.b16 %v106, %v102
    %v111 = vpack.c.b16 %v107, %v103
    %v112 = vpack.c.b16 %v108, %v104
    %vm117 = vcmask 130048
    %v119 = vsel %vm117, %v70, 0
    %121 = vmatprep.subr.bf16.mxu0 0
    %122 = vmatpush1.bf16.msra.mxu0 0
    %123 = vmatprep.subr.bf16.mxu0 0
    %124 = vmatpush1.bf16.msra.mxu0 0
    %125 = vmatprep.subr.bf16.mxu0 0
    %126 = vmatpush1.bf16.msra.mxu0 0
    %127 = vmatprep.subr.bf16.mxu0 0
    %128 = vmatpush1.bf16.msra.mxu0 0
    %129 = vmatprep.subr.bf16.mxu0 0
    %130 = vmatpush1.bf16.msra.mxu0 0
    %131 = vmatprep.subr.bf16.mxu0 0
    %132 = vmatpush1.bf16.msra.mxu0 0
    %133 = vmatprep.subr.bf16.mxu0 0
    %134 = vmatpush1.bf16.msra.mxu0 0
    %135 = vmatprep.subr.bf16.mxu0 %v110
    %136 = vmatpush1.bf16.msra.mxu0 %v109
    %137 = vmatprep.subr.bf16.mxu0 0
    %138 = vmatpush2.bf16.msra.mxu0 0
    %139 = vmatprep.subr.bf16.mxu0 0
    %140 = vmatpush2.bf16.msra.mxu0 0
    %141 = vmatprep.subr.bf16.mxu0 0
    %142 = vmatpush2.bf16.msra.mxu0 0
    %143 = vmatprep.subr.bf16.mxu0 0
    %144 = vmatpush2.bf16.msra.mxu0 0
    %145 = vmatprep.subr.bf16.mxu0 0
    %146 = vmatpush2.bf16.msra.mxu0 0
    %147 = vmatprep.subr.bf16.mxu0 0
    %148 = vmatpush2.bf16.msra.mxu0 0
    %149 = vmatprep.subr.bf16.mxu0 0
    %150 = vmatpush2.bf16.msra.mxu0 0
    %151 = vmatprep.subr.bf16.mxu0 0
    %152 = vmatpush2.bf16.msra.mxu0 0
    %153 = vmatprep.mubr.bf16.mxu0 0
    %154 = vmatmul.mubr.bf16.gmra.mxu0 %v119
    %v155 = vpop.f32.mrf.mxu0
    %v156 = vadd.f32 %v80, %v155
    %v157 = vpop.f32.mrf.mxu0
    %v158 = vadd.f32 %v84, %v157
    %v159 = vpop.f32.mrf.mxu0
    %v160 = vadd.f32 %v80, %v159
    %v161 = vpop.f32.mrf.mxu0
    %v162 = vadd.f32 %v84, %v161
    %163 = vdwg.mxu0
    %164 = vmatprep.subr.bf16.mxu0 0
    %165 = vmatpush1.bf16.msra.mxu0 0
    %166 = vmatprep.subr.bf16.mxu0 0
    %167 = vmatpush1.bf16.msra.mxu0 0
    %168 = vmatprep.subr.bf16.mxu0 0
    %169 = vmatpush1.bf16.msra.mxu0 0
    %170 = vmatprep.subr.bf16.mxu0 0
    %171 = vmatpush1.bf16.msra.mxu0 0
    %172 = vmatprep.subr.bf16.mxu0 0
    %173 = vmatpush1.bf16.msra.mxu0 0
    %174 = vmatprep.subr.bf16.mxu0 0
    %175 = vmatpush1.bf16.msra.mxu0 0
    %176 = vmatprep.subr.bf16.mxu0 0
    %177 = vmatpush1.bf16.msra.mxu0 0
    %178 = vmatprep.subr.bf16.mxu0 %v112
    %179 = vmatpush1.bf16.msra.mxu0 %v111
    %180 = vmatprep.subr.bf16.mxu0 0
    %181 = vmatpush2.bf16.msra.mxu0 0
    %182 = vmatprep.subr.bf16.mxu0 0
    %183 = vmatpush2.bf16.msra.mxu0 0
    %184 = vmatprep.subr.bf16.mxu0 0
    %185 = vmatpush2.bf16.msra.mxu0 0
    %186 = vmatprep.subr.bf16.mxu0 0
    %187 = vmatpush2.bf16.msra.mxu0 0
    %188 = vmatprep.subr.bf16.mxu0 0
    %189 = vmatpush2.bf16.msra.mxu0 0
    %190 = vmatprep.subr.bf16.mxu0 0
    %191 = vmatpush2.bf16.msra.mxu0 0
    %192 = vmatprep.subr.bf16.mxu0 0
    %193 = vmatpush2.bf16.msra.mxu0 0
    %194 = vmatprep.subr.bf16.mxu0 0
    %195 = vmatpush2.bf16.msra.mxu0 0
    %196 = vmatprep.mubr.bf16.mxu0 0
    %197 = vmatmul.mubr.bf16.gmra.mxu0 %v119
    %v198 = vpop.f32.mrf.mxu0
    %v199 = vadd.f32 %v88, %v198
    %v200 = vpop.f32.mrf.mxu0
    %v201 = vadd.f32 %v92, %v200
    %v202 = vpop.f32.mrf.mxu0
    %v203 = vadd.f32 %v88, %v202
    %v204 = vpop.f32.mrf.mxu0
    %v205 = vadd.f32 %v92, %v204
    %206 = vdwg.mxu0
    %v207 = vmax.f32 %v156, 0.0
    %v208 = vmax.f32 %v158, 0.0
    %v209 = vmax.f32 %v199, 0.0
    %v210 = vmax.f32 %v201, 0.0
    %v211 = vmax.f32 %v160, 0.0
    %v212 = vmax.f32 %v162, 0.0
    %v213 = vmax.f32 %v203, 0.0
    %v214 = vmax.f32 %v205, 0.0
    %v215 = vpack.c.bf16 %v211, %v207
    %v216 = vpack.c.bf16 %v212, %v208
    %v217 = vpack.c.bf16 %v213, %v209
    %v218 = vpack.c.bf16 %v214, %v210
    %v219 = vld [vmem:[#allocation4] sm:$0xff]
    %v220 = vld [vmem:[#allocation4 + $0x8] sm:$0xf]
    %v221 = vld [vmem:[#allocation4 + $0xc] sm:$0xff]
    %v222 = vld [vmem:[#allocation4 + $0x14] sm:$0xf]
    %v223 = vld [vmem:[#allocation4 + $0x18] sm:$0xff]
    %v224 = vld [vmem:[#allocation4 + $0x20] sm:$0xf]
    %v225 = vld [vmem:[#allocation4 + $0x24] sm:$0xff]
    %v226 = vld [vmem:[#allocation4 + $0x2c] sm:$0xf]
    %v227 = vld [vmem:[#allocation4 + $0x30] sm:$0xff]
    %v228 = vld [vmem:[#allocation4 + $0x38] sm:$0xf]
    %v229 = vld [vmem:[#allocation4 + $0x3c] sm:$0xff]
    %v230 = vld [vmem:[#allocation4 + $0x44] sm:$0xf]
    %v231 = vld [vmem:[#allocation4 + $0x48] sm:$0xff]
    %v232 = vld [vmem:[#allocation4 + $0x50] sm:$0xf]
    %v233 = vld [vmem:[#allocation4 + $0x54] sm:$0xff]
    %v234 = vld [vmem:[#allocation4 + $0x5c] sm:$0xf]
    %v235 = vld [vmem:[#allocation4 + $0x60] sm:$0xff]
    %v236 = vld [vmem:[#allocation4 + $0x68] sm:$0xf]
    %v237 = vld [vmem:[#allocation4 + $0x6c] sm:$0xff]
    %v238 = vld [vmem:[#allocation4 + $0x74] sm:$0xf]
    %v239 = vld [vmem:[#allocation4 + $0x78] sm:$0xff]
    %v240 = vld [vmem:[#allocation4 + $0x80] sm:$0xf]
    %v241 = vld [vmem:[#allocation4 + $0x84] sm:$0xff]
    %v242 = vld [vmem:[#allocation4 + $0x8c] sm:$0xf]
    %v243 = vld [vmem:[#allocation4 + $0x90] sm:$0xff]
    %v244 = vld [vmem:[#allocation4 + $0x98] sm:$0xf]
    %v245 = vld [vmem:[#allocation4 + $0x9c] sm:$0xff]
    %v246 = vld [vmem:[#allocation4 + $0xa4] sm:$0xf]
    %v247 = vld [vmem:[#allocation4 + $0xa8] sm:$0xff]
    %v248 = vld [vmem:[#allocation4 + $0xb0] sm:$0xf]
    %v249 = vld [vmem:[#allocation4 + $0xb4] sm:$0xff]
    %v250 = vld [vmem:[#allocation4 + $0xbc] sm:$0xf]
    %v251 = vld [vmem:[#allocation4 + $0xc0] sm:$0xff]
    %v252 = vld [vmem:[#allocation4 + $0xc8] sm:$0xf]
    %v253 = vld [vmem:[#allocation4 + $0xcc] sm:$0xff]
    %v254 = vld [vmem:[#allocation4 + $0xd4] sm:$0xf]
    %v255 = vld [vmem:[#allocation4 + $0xd8] sm:$0xff]
    %v256 = vld [vmem:[#allocation4 + $0xe0] sm:$0xf]
    %v257 = vld [vmem:[#allocation4 + $0xe4] sm:$0xff]
    %v258 = vld [vmem:[#allocation4 + $0xec] sm:$0xf]
    %v259 = vld [vmem:[#allocation4 + $0xf0] sm:$0xff]
    %v260 = vld [vmem:[#allocation4 + $0xf8] sm:$0xf]
    %v261 = vld [vmem:[#allocation4 + $0xfc] sm:$0xff]
    %v262 = vld [vmem:[#allocation4 + $0x104] sm:$0xf]
    %v263 = vld [vmem:[#allocation4 + $0x108] sm:$0xff]
    %v264 = vld [vmem:[#allocation4 + $0x110] sm:$0xf]
    %v265 = vld [vmem:[#allocation4 + $0x114] sm:$0xff]
    %v266 = vld [vmem:[#allocation4 + $0x11c] sm:$0xf]
    %v267 = vld [vmem:[#allocation4 + $0x120] sm:$0xff]
    %v268 = vld [vmem:[#allocation4 + $0x128] sm:$0xf]
    %v269 = vld [vmem:[#allocation4 + $0x12c] sm:$0xff]
    %v270 = vld [vmem:[#allocation4 + $0x134] sm:$0xf]
    %v271 = vld [vmem:[#allocation4 + $0x138] sm:$0xff]
    %v272 = vld [vmem:[#allocation4 + $0x140] sm:$0xf]
    %v273 = vld [vmem:[#allocation4 + $0x144] sm:$0xff]
    %v274 = vld [vmem:[#allocation4 + $0x14c] sm:$0xf]
    %v275 = vld [vmem:[#allocation4 + $0x150] sm:$0xff]
    %v276 = vld [vmem:[#allocation4 + $0x158] sm:$0xf]
    %v277 = vld [vmem:[#allocation4 + $0x15c] sm:$0xff]
    %v278 = vld [vmem:[#allocation4 + $0x164] sm:$0xf]
    %v279 = vld [vmem:[#allocation4 + $0x168] sm:$0xff]
    %v280 = vld [vmem:[#allocation4 + $0x170] sm:$0xf]
    %v281 = vld [vmem:[#allocation4 + $0x174] sm:$0xff]
    %v282 = vld [vmem:[#allocation4 + $0x17c] sm:$0xf]
    %v283 = vld [vmem:[#allocation4 + $0x180] sm:$0xff]
    %v284 = vld [vmem:[#allocation4 + $0x188] sm:$0xf]
    %v285 = vld [vmem:[#allocation4 + $0x18c] sm:$0xff]
    %v286 = vld [vmem:[#allocation4 + $0x194] sm:$0xf]
    %v287 = vld [vmem:[#allocation4 + $0x198] sm:$0xff]
    %v288 = vld [vmem:[#allocation4 + $0x1a0] sm:$0xf]
    %v289 = vld [vmem:[#allocation4 + $0x1a4] sm:$0xff]
    %v290 = vld [vmem:[#allocation4 + $0x1ac] sm:$0xf]
    %v291 = vld [vmem:[#allocation4 + $0x1b0] sm:$0xff]
    %v292 = vld [vmem:[#allocation4 + $0x1b8] sm:$0xf]
    %v293 = vld [vmem:[#allocation4 + $0x1bc] sm:$0xff]
    %v294 = vld [vmem:[#allocation4 + $0x1c4] sm:$0xf]
    %v295 = vld [vmem:[#allocation4 + $0x1c8] sm:$0xff]
    %v296 = vld [vmem:[#allocation4 + $0x1d0] sm:$0xf]
    %v297 = vld [vmem:[#allocation4 + $0x1d4] sm:$0xff]
    %v298 = vld [vmem:[#allocation4 + $0x1dc] sm:$0xf]
    %v299 = vld [vmem:[#allocation4 + $0x1e0] sm:$0xff]
    %v300 = vld [vmem:[#allocation4 + $0x1e8] sm:$0xf]
    %v301 = vld [vmem:[#allocation4 + $0x1ec] sm:$0xff]
    %v302 = vld [vmem:[#allocation4 + $0x1f4] sm:$0xf]
    %v303 = vld [vmem:[#allocation4 + $0x1f8] sm:$0xff]
    %v304 = vld [vmem:[#allocation4 + $0x200] sm:$0xf]
    %v305 = vld [vmem:[#allocation4 + $0x204] sm:$0xff]
    %v306 = vld [vmem:[#allocation4 + $0x20c] sm:$0xf]
    %v307 = vld [vmem:[#allocation4 + $0x210] sm:$0xff]
    %v308 = vld [vmem:[#allocation4 + $0x218] sm:$0xf]
    %v309 = vld [vmem:[#allocation4 + $0x21c] sm:$0xff]
    %v310 = vld [vmem:[#allocation4 + $0x224] sm:$0xf]
    %v311 = vld [vmem:[#allocation4 + $0x228] sm:$0xff]
    %v312 = vld [vmem:[#allocation4 + $0x230] sm:$0xf]
    %v313 = vld [vmem:[#allocation4 + $0x234] sm:$0xff]
    %v314 = vld [vmem:[#allocation4 + $0x23c] sm:$0xf]
    %v315 = vld [vmem:[#allocation4 + $0x240] sm:$0xff]
    %v316 = vld [vmem:[#allocation4 + $0x248] sm:$0xf]
    %v317 = vld [vmem:[#allocation4 + $0x24c] sm:$0xff]
    %v318 = vld [vmem:[#allocation4 + $0x254] sm:$0xf]
    %v319 = vld [vmem:[#allocation4 + $0x258] sm:$0xff]
    %v320 = vld [vmem:[#allocation4 + $0x260] sm:$0xf]
    %v321 = vld [vmem:[#allocation4 + $0x264] sm:$0xff]
    %v322 = vld [vmem:[#allocation4 + $0x26c] sm:$0xf]
    %v323 = vld [vmem:[#allocation4 + $0x270] sm:$0xff]
    %v324 = vld [vmem:[#allocation4 + $0x278] sm:$0xf]
    %v325 = vld [vmem:[#allocation4 + $0x27c] sm:$0xff]
    %v326 = vld [vmem:[#allocation4 + $0x284] sm:$0xf]
    %v327 = vld [vmem:[#allocation4 + $0x288] sm:$0xff]
    %v328 = vld [vmem:[#allocation4 + $0x290] sm:$0xf]
    %v329 = vld [vmem:[#allocation4 + $0x294] sm:$0xff]
    %v330 = vld [vmem:[#allocation4 + $0x29c] sm:$0xf]
    %v331 = vld [vmem:[#allocation4 + $0x2a0] sm:$0xff]
    %v332 = vld [vmem:[#allocation4 + $0x2a8] sm:$0xf]
    %v333 = vld [vmem:[#allocation4 + $0x2ac] sm:$0xff]
    %v334 = vld [vmem:[#allocation4 + $0x2b4] sm:$0xf]
    %v335 = vld [vmem:[#allocation4 + $0x2b8] sm:$0xff]
    %v336 = vld [vmem:[#allocation4 + $0x2c0] sm:$0xf]
    %v337 = vld [vmem:[#allocation4 + $0x2c4] sm:$0xff]
    %v338 = vld [vmem:[#allocation4 + $0x2cc] sm:$0xf]
    %v339 = vld [vmem:[#allocation4 + $0x2d0] sm:$0xff]
    %v340 = vld [vmem:[#allocation4 + $0x2d8] sm:$0xf]
    %v341 = vld [vmem:[#allocation4 + $0x2dc] sm:$0xff]
    %v342 = vld [vmem:[#allocation4 + $0x2e4] sm:$0xf]
    %v343 = vld [vmem:[#allocation4 + $0x2e8] sm:$0xff]
    %v344 = vld [vmem:[#allocation4 + $0x2f0] sm:$0xf]
    %v345 = vld [vmem:[#allocation4 + $0x2f4] sm:$0xff]
    %v346 = vld [vmem:[#allocation4 + $0x2fc] sm:$0xf]
    %v347 = vld [vmem:[%s4] sm:$0x7]
    %v349 = vlaneseq
    %v350 = vshrl.u32 %v349, 7
    %v351 = vsub.s32 0, %v350
    %v352 = vrot.slane %v347, %v351
    %v353 = vlaneseq
    %v354 = vshrl.u32 %v353, 7
    %v355 = vsub.s32 1, %v354
    %v356 = vrot.slane %v347, %v355
    %v357 = vlaneseq
    %v358 = vshrl.u32 %v357, 7
    %v359 = vsub.s32 2, %v358
    %v360 = vrot.slane %v347, %v359
    %v492 = vunpack.c.l.b16 %v219
    %v493 = vunpack.c.h.b16 %v219
    %v494 = vunpack.c.l.b16 %v220
    %v495 = vunpack.c.l.b16 %v221
    %v496 = vunpack.c.h.b16 %v221
    %v497 = vunpack.c.l.b16 %v222
    %v498 = vunpack.c.l.b16 %v223
    %v499 = vunpack.c.h.b16 %v223
    %v500 = vunpack.c.l.b16 %v224
    %v501 = vunpack.c.l.b16 %v225
    %v502 = vunpack.c.h.b16 %v225
    %v503 = vunpack.c.l.b16 %v226
    %v504 = vunpack.c.l.b16 %v227
    %v505 = vunpack.c.h.b16 %v227
    %v506 = vunpack.c.l.b16 %v228
    %v507 = vunpack.c.l.b16 %v229
    %v508 = vunpack.c.h.b16 %v229
    %v509 = vunpack.c.l.b16 %v230
    %v510 = vunpack.c.l.b16 %v231
    %v511 = vunpack.c.h.b16 %v231
    %v512 = vunpack.c.l.b16 %v232
    %v513 = vunpack.c.l.b16 %v233
    %v514 = vunpack.c.h.b16 %v233
    %v515 = vunpack.c.l.b16 %v234
    %v516 = vunpack.c.l.b16 %v235
    %v517 = vunpack.c.h.b16 %v235
    %v518 = vunpack.c.l.b16 %v236
    %v519 = vunpack.c.l.b16 %v237
    %v520 = vunpack.c.h.b16 %v237
    %v521 = vunpack.c.l.b16 %v238
    %v522 = vunpack.c.l.b16 %v239
    %v523 = vunpack.c.h.b16 %v239
    %v524 = vunpack.c.l.b16 %v240
    %v525 = vunpack.c.l.b16 %v241
    %v526 = vunpack.c.h.b16 %v241
    %v527 = vunpack.c.l.b16 %v242
    %v528 = vunpack.c.l.b16 %v243
    %v529 = vunpack.c.h.b16 %v243
    %v530 = vunpack.c.l.b16 %v244
    %v531 = vunpack.c.l.b16 %v245
    %v532 = vunpack.c.h.b16 %v245
    %v533 = vunpack.c.l.b16 %v246
    %v534 = vunpack.c.l.b16 %v247
    %v535 = vunpack.c.h.b16 %v247
    %v536 = vunpack.c.l.b16 %v248
    %v537 = vunpack.c.l.b16 %v249
    %v538 = vunpack.c.h.b16 %v249
    %v539 = vunpack.c.l.b16 %v250
    %v540 = vunpack.c.l.b16 %v251
    %v541 = vunpack.c.h.b16 %v251
    %v542 = vunpack.c.l.b16 %v252
    %v543 = vunpack.c.l.b16 %v253
    %v544 = vunpack.c.h.b16 %v253
    %v545 = vunpack.c.l.b16 %v254
    %v546 = vunpack.c.l.b16 %v255
    %v547 = vunpack.c.h.b16 %v255
    %v548 = vunpack.c.l.b16 %v256
    %v549 = vunpack.c.l.b16 %v257
    %v550 = vunpack.c.h.b16 %v257
    %v551 = vunpack.c.l.b16 %v258
    %v552 = vunpack.c.l.b16 %v259
    %v553 = vunpack.c.h.b16 %v259
    %v554 = vunpack.c.l.b16 %v260
    %v555 = vunpack.c.l.b16 %v261
    %v556 = vunpack.c.h.b16 %v261
    %v557 = vunpack.c.l.b16 %v262
    %v558 = vunpack.c.l.b16 %v263
    %v559 = vunpack.c.h.b16 %v263
    %v560 = vunpack.c.l.b16 %v264
    %v561 = vunpack.c.l.b16 %v265
    %v562 = vunpack.c.h.b16 %v265
    %v563 = vunpack.c.l.b16 %v266
    %v564 = vunpack.c.l.b16 %v267
    %v565 = vunpack.c.h.b16 %v267
    %v566 = vunpack.c.l.b16 %v268
    %v567 = vunpack.c.l.b16 %v269
    %v568 = vunpack.c.h.b16 %v269
    %v569 = vunpack.c.l.b16 %v270
    %v570 = vunpack.c.l.b16 %v271
    %v571 = vunpack.c.h.b16 %v271
    %v572 = vunpack.c.l.b16 %v272
    %v573 = vunpack.c.l.b16 %v273
    %v574 = vunpack.c.h.b16 %v273
    %v575 = vunpack.c.l.b16 %v274
    %v576 = vunpack.c.l.b16 %v275
    %v577 = vunpack.c.h.b16 %v275
    %v578 = vunpack.c.l.b16 %v276
    %v579 = vunpack.c.l.b16 %v277
    %v580 = vunpack.c.h.b16 %v277
    %v581 = vunpack.c.l.b16 %v278
    %v582 = vunpack.c.l.b16 %v279
    %v583 = vunpack.c.h.b16 %v279
    %v584 = vunpack.c.l.b16 %v280
    %v585 = vunpack.c.l.b16 %v281
    %v586 = vunpack.c.h.b16 %v281
    %v587 = vunpack.c.l.b16 %v282
    %v588 = vunpack.c.l.b16 %v283
    %v589 = vunpack.c.h.b16 %v283
    %v590 = vunpack.c.l.b16 %v284
    %v591 = vunpack.c.l.b16 %v285
    %v592 = vunpack.c.h.b16 %v285
    %v593 = vunpack.c.l.b16 %v286
    %v594 = vunpack.c.l.b16 %v287
    %v595 = vunpack.c.h.b16 %v287
    %v596 = vunpack.c.l.b16 %v288
    %v597 = vunpack.c.l.b16 %v289
    %v598 = vunpack.c.h.b16 %v289
    %v599 = vunpack.c.l.b16 %v290
    %v600 = vunpack.c.l.b16 %v291
    %v601 = vunpack.c.h.b16 %v291
    %v602 = vunpack.c.l.b16 %v292
    %v603 = vunpack.c.l.b16 %v293
    %v604 = vunpack.c.h.b16 %v293
    %v605 = vunpack.c.l.b16 %v294
    %v606 = vunpack.c.l.b16 %v295
    %v607 = vunpack.c.h.b16 %v295
    %v608 = vunpack.c.l.b16 %v296
    %v609 = vunpack.c.l.b16 %v297
    %v610 = vunpack.c.h.b16 %v297
    %v611 = vunpack.c.l.b16 %v298
    %v612 = vunpack.c.l.b16 %v299
    %v613 = vunpack.c.h.b16 %v299
    %v614 = vunpack.c.l.b16 %v300
    %v615 = vunpack.c.l.b16 %v301
    %v616 = vunpack.c.h.b16 %v301
    %v617 = vunpack.c.l.b16 %v302
    %v618 = vunpack.c.l.b16 %v303
    %v619 = vunpack.c.h.b16 %v303
    %v620 = vunpack.c.l.b16 %v304
    %v621 = vunpack.c.l.b16 %v305
    %v622 = vunpack.c.h.b16 %v305
    %v623 = vunpack.c.l.b16 %v306
    %v624 = vunpack.c.l.b16 %v307
    %v625 = vunpack.c.h.b16 %v307
    %v626 = vunpack.c.l.b16 %v308
    %v627 = vunpack.c.l.b16 %v309
    %v628 = vunpack.c.h.b16 %v309
    %v629 = vunpack.c.l.b16 %v310
    %v630 = vunpack.c.l.b16 %v311
    %v631 = vunpack.c.h.b16 %v311
    %v632 = vunpack.c.l.b16 %v312
    %v633 = vunpack.c.l.b16 %v313
    %v634 = vunpack.c.h.b16 %v313
    %v635 = vunpack.c.l.b16 %v314
    %v636 = vunpack.c.l.b16 %v315
    %v637 = vunpack.c.h.b16 %v315
    %v638 = vunpack.c.l.b16 %v316
    %v639 = vunpack.c.l.b16 %v317
    %v640 = vunpack.c.h.b16 %v317
    %v641 = vunpack.c.l.b16 %v318
    %v642 = vunpack.c.l.b16 %v319
    %v643 = vunpack.c.h.b16 %v319
    %v644 = vunpack.c.l.b16 %v320
    %v645 = vunpack.c.l.b16 %v321
    %v646 = vunpack.c.h.b16 %v321
    %v647 = vunpack.c.l.b16 %v322
    %v648 = vunpack.c.l.b16 %v323
    %v649 = vunpack.c.h.b16 %v323
    %v650 = vunpack.c.l.b16 %v324
    %v651 = vunpack.c.l.b16 %v325
    %v652 = vunpack.c.h.b16 %v325
    %v653 = vunpack.c.l.b16 %v326
    %v654 = vunpack.c.l.b16 %v327
    %v655 = vunpack.c.h.b16 %v327
    %v656 = vunpack.c.l.b16 %v328
    %v657 = vunpack.c.l.b16 %v329
    %v658 = vunpack.c.h.b16 %v329
    %v659 = vunpack.c.l.b16 %v330
    %v660 = vunpack.c.l.b16 %v331
    %v661 = vunpack.c.h.b16 %v331
    %v662 = vunpack.c.l.b16 %v332
    %v663 = vunpack.c.l.b16 %v333
    %v664 = vunpack.c.h.b16 %v333
    %v665 = vunpack.c.l.b16 %v334
    %v666 = vunpack.c.l.b16 %v335
    %v667 = vunpack.c.h.b16 %v335
    %v668 = vunpack.c.l.b16 %v336
    %v669 = vunpack.c.l.b16 %v337
    %v670 = vunpack.c.h.b16 %v337
    %v671 = vunpack.c.l.b16 %v338
    %v672 = vunpack.c.l.b16 %v339
    %v673 = vunpack.c.h.b16 %v339
    %v674 = vunpack.c.l.b16 %v340
    %v675 = vunpack.c.l.b16 %v341
    %v676 = vunpack.c.h.b16 %v341
    %v677 = vunpack.c.l.b16 %v342
    %v678 = vunpack.c.l.b16 %v343
    %v679 = vunpack.c.h.b16 %v343
    %v680 = vunpack.c.l.b16 %v344
    %v681 = vunpack.c.l.b16 %v345
    %v682 = vunpack.c.h.b16 %v345
    %v683 = vunpack.c.l.b16 %v346
    %v684 = vpack.c.b16 %v495, %v492
    %v685 = vpack.c.b16 %v496, %v493
    %v686 = vpack.c.b16 %v497, %v494
    %v687 = vpack.c.b16 %v501, %v498
    %v688 = vpack.c.b16 %v502, %v499
    %v689 = vpack.c.b16 %v503, %v500
    %v690 = vpack.c.b16 %v507, %v504
    %v691 = vpack.c.b16 %v508, %v505
    %v692 = vpack.c.b16 %v509, %v506
    %v693 = vpack.c.b16 %v513, %v510
    %v694 = vpack.c.b16 %v514, %v511
    %v695 = vpack.c.b16 %v515, %v512
    %v696 = vpack.c.b16 %v519, %v516
    %v697 = vpack.c.b16 %v520, %v517
    %v698 = vpack.c.b16 %v521, %v518
    %v699 = vpack.c.b16 %v525, %v522
    %v700 = vpack.c.b16 %v526, %v523
    %v701 = vpack.c.b16 %v527, %v524
    %v702 = vpack.c.b16 %v531, %v528
    %v703 = vpack.c.b16 %v532, %v529
    %v704 = vpack.c.b16 %v533, %v530
    %v705 = vpack.c.b16 %v537, %v534
    %v706 = vpack.c.b16 %v538, %v535
    %v707 = vpack.c.b16 %v539, %v536
    %v708 = vpack.c.b16 %v543, %v540
    %v709 = vpack.c.b16 %v544, %v541
    %v710 = vpack.c.b16 %v545, %v542
    %v711 = vpack.c.b16 %v549, %v546
    %v712 = vpack.c.b16 %v550, %v547
    %v713 = vpack.c.b16 %v551, %v548
    %v714 = vpack.c.b16 %v555, %v552
    %v715 = vpack.c.b16 %v556, %v553
    %v716 = vpack.c.b16 %v557, %v554
    %v717 = vpack.c.b16 %v561, %v558
    %v718 = vpack.c.b16 %v562, %v559
    %v719 = vpack.c.b16 %v563, %v560
    %v720 = vpack.c.b16 %v567, %v564
    %v721 = vpack.c.b16 %v568, %v565
    %v722 = vpack.c.b16 %v569, %v566
    %v723 = vpack.c.b16 %v573, %v570
    %v724 = vpack.c.b16 %v574, %v571
    %v725 = vpack.c.b16 %v575, %v572
    %v726 = vpack.c.b16 %v579, %v576
    %v727 = vpack.c.b16 %v580, %v577
    %v728 = vpack.c.b16 %v581, %v578
    %v729 = vpack.c.b16 %v585, %v582
    %v730 = vpack.c.b16 %v586, %v583
    %v731 = vpack.c.b16 %v587, %v584
    %v732 = vpack.c.b16 %v591, %v588
    %v733 = vpack.c.b16 %v592, %v589
    %v734 = vpack.c.b16 %v593, %v590
    %v735 = vpack.c.b16 %v597, %v594
    %v736 = vpack.c.b16 %v598, %v595
    %v737 = vpack.c.b16 %v599, %v596
    %v738 = vpack.c.b16 %v603, %v600
    %v739 = vpack.c.b16 %v604, %v601
    %v740 = vpack.c.b16 %v605, %v602
    %v741 = vpack.c.b16 %v609, %v606
    %v742 = vpack.c.b16 %v610, %v607
    %v743 = vpack.c.b16 %v611, %v608
    %v744 = vpack.c.b16 %v615, %v612
    %v745 = vpack.c.b16 %v616, %v613
    %v746 = vpack.c.b16 %v617, %v614
    %v747 = vpack.c.b16 %v621, %v618
    %v748 = vpack.c.b16 %v622, %v619
    %v749 = vpack.c.b16 %v623, %v620
    %v750 = vpack.c.b16 %v627, %v624
    %v751 = vpack.c.b16 %v628, %v625
    %v752 = vpack.c.b16 %v629, %v626
    %v753 = vpack.c.b16 %v633, %v630
    %v754 = vpack.c.b16 %v634, %v631
    %v755 = vpack.c.b16 %v635, %v632
    %v756 = vpack.c.b16 %v639, %v636
    %v757 = vpack.c.b16 %v640, %v637
    %v758 = vpack.c.b16 %v641, %v638
    %v759 = vpack.c.b16 %v645, %v642
    %v760 = vpack.c.b16 %v646, %v643
    %v761 = vpack.c.b16 %v647, %v644
    %v762 = vpack.c.b16 %v651, %v648
    %v763 = vpack.c.b16 %v652, %v649
    %v764 = vpack.c.b16 %v653, %v650
    %v765 = vpack.c.b16 %v657, %v654
    %v766 = vpack.c.b16 %v658, %v655
    %v767 = vpack.c.b16 %v659, %v656
    %v768 = vpack.c.b16 %v663, %v660
    %v769 = vpack.c.b16 %v664, %v661
    %v770 = vpack.c.b16 %v665, %v662
    %v771 = vpack.c.b16 %v669, %v666
    %v772 = vpack.c.b16 %v670, %v667
    %v773 = vpack.c.b16 %v671, %v668
    %v774 = vpack.c.b16 %v675, %v672
    %v775 = vpack.c.b16 %v676, %v673
    %v776 = vpack.c.b16 %v677, %v674
    %v777 = vpack.c.b16 %v681, %v678
    %v778 = vpack.c.b16 %v682, %v679
    %v779 = vpack.c.b16 %v683, %v680
    %876 = vmatprep.subr.bf16.mxu0 %v706
    %877 = vmatpush1.bf16.msra.mxu0 %v705
    %878 = vmatprep.subr.bf16.mxu0 %v703
    %879 = vmatpush1.bf16.msra.mxu0 %v702
    %880 = vmatprep.subr.bf16.mxu0 %v700
    %881 = vmatpush1.bf16.msra.mxu0 %v699
    %882 = vmatprep.subr.bf16.mxu0 %v697
    %883 = vmatpush1.bf16.msra.mxu0 %v696
    %884 = vmatprep.subr.bf16.mxu0 %v694
    %885 = vmatpush1.bf16.msra.mxu0 %v693
    %886 = vmatprep.subr.bf16.mxu0 %v691
    %887 = vmatpush1.bf16.msra.mxu0 %v690
    %888 = vmatprep.subr.bf16.mxu0 %v688
    %889 = vmatpush1.bf16.msra.mxu0 %v687
    %890 = vmatprep.subr.bf16.mxu0 %v685
    %891 = vmatpush1.bf16.msra.mxu0 %v684
    %892 = vmatprep.subr.bf16.mxu0 %v730
    %893 = vmatpush2.bf16.msra.mxu0 %v729
    %894 = vmatprep.subr.bf16.mxu0 %v727
    %895 = vmatpush2.bf16.msra.mxu0 %v726
    %896 = vmatprep.subr.bf16.mxu0 %v724
    %897 = vmatpush2.bf16.msra.mxu0 %v723
    %898 = vmatprep.subr.bf16.mxu0 %v721
    %899 = vmatpush2.bf16.msra.mxu0 %v720
    %900 = vmatprep.subr.bf16.mxu0 %v718
    %901 = vmatpush2.bf16.msra.mxu0 %v717
    %902 = vmatprep.subr.bf16.mxu0 %v715
    %903 = vmatpush2.bf16.msra.mxu0 %v714
    %904 = vmatprep.subr.bf16.mxu0 %v712
    %905 = vmatpush2.bf16.msra.mxu0 %v711
    %906 = vmatprep.subr.bf16.mxu0 %v709
    %907 = vmatpush2.bf16.msra.mxu0 %v708
    %908 = vmatprep.mubr.bf16.mxu0 %v216
    %909 = vmatmul.mubr.bf16.gmra.mxu0 %v215
    %v910 = vpop.f32.mrf.mxu0
    %v911 = vadd.f32 %v352, %v910
    %v912 = vpop.f32.mrf.mxu0
    %v913 = vadd.f32 %v356, %v912
    %v914 = vpop.f32.mrf.mxu0
    %v915 = vadd.f32 %v352, %v914
    %v916 = vpop.f32.mrf.mxu0
    %v917 = vadd.f32 %v356, %v916
    %918 = vdwg.mxu0
    %919 = vmatprep.subr.bf16.mxu0 %v754
    %920 = vmatpush1.bf16.msra.mxu0 %v753
    %921 = vmatprep.subr.bf16.mxu0 %v751
    %922 = vmatpush1.bf16.msra.mxu0 %v750
    %923 = vmatprep.subr.bf16.mxu0 %v748
    %924 = vmatpush1.bf16.msra.mxu0 %v747
    %925 = vmatprep.subr.bf16.mxu0 %v745
    %926 = vmatpush1.bf16.msra.mxu0 %v744
    %927 = vmatprep.subr.bf16.mxu0 %v742
    %928 = vmatpush1.bf16.msra.mxu0 %v741
    %929 = vmatprep.subr.bf16.mxu0 %v739
    %930 = vmatpush1.bf16.msra.mxu0 %v738
    %931 = vmatprep.subr.bf16.mxu0 %v736
    %932 = vmatpush1.bf16.msra.mxu0 %v735
    %933 = vmatprep.subr.bf16.mxu0 %v733
    %934 = vmatpush1.bf16.msra.mxu0 %v732
    %935 = vmatprep.subr.bf16.mxu0 %v778
    %936 = vmatpush2.bf16.msra.mxu0 %v777
    %937 = vmatprep.subr.bf16.mxu0 %v775
    %938 = vmatpush2.bf16.msra.mxu0 %v774
    %939 = vmatprep.subr.bf16.mxu0 %v772
    %940 = vmatpush2.bf16.msra.mxu0 %v771
    %941 = vmatprep.subr.bf16.mxu0 %v769
    %942 = vmatpush2.bf16.msra.mxu0 %v768
    %943 = vmatprep.subr.bf16.mxu0 %v766
    %944 = vmatpush2.bf16.msra.mxu0 %v765
    %945 = vmatprep.subr.bf16.mxu0 %v763
    %946 = vmatpush2.bf16.msra.mxu0 %v762
    %947 = vmatprep.subr.bf16.mxu0 %v760
    %948 = vmatpush2.bf16.msra.mxu0 %v759
    %949 = vmatprep.subr.bf16.mxu0 %v757
    %950 = vmatpush2.bf16.msra.mxu0 %v756
    %951 = vmatprep.mubr.bf16.mxu0 %v218
    %952 = vmatmul.mubr.bf16.gmra.mxu0 %v217
    %v953 = vpop.f32.mrf.mxu0
    %v954 = vadd.f32 %v911, %v953
    %v955 = vpop.f32.mrf.mxu0
    %v956 = vadd.f32 %v913, %v955
    %v957 = vpop.f32.mrf.mxu0
    %v958 = vadd.f32 %v915, %v957
    %v959 = vpop.f32.mrf.mxu0
    %v960 = vadd.f32 %v917, %v959
    %961 = vdwg.mxu0
    %962 = vmatprep.subr.bf16.mxu0 0
    %963 = vmatpush1.bf16.msra.mxu0 %v707
    %964 = vmatprep.subr.bf16.mxu0 0
    %965 = vmatpush1.bf16.msra.mxu0 %v704
    %966 = vmatprep.subr.bf16.mxu0 0
    %967 = vmatpush1.bf16.msra.mxu0 %v701
    %968 = vmatprep.subr.bf16.mxu0 0
    %969 = vmatpush1.bf16.msra.mxu0 %v698
    %970 = vmatprep.subr.bf16.mxu0 0
    %971 = vmatpush1.bf16.msra.mxu0 %v695
    %972 = vmatprep.subr.bf16.mxu0 0
    %973 = vmatpush1.bf16.msra.mxu0 %v692
    %974 = vmatprep.subr.bf16.mxu0 0
    %975 = vmatpush1.bf16.msra.mxu0 %v689
    %976 = vmatprep.subr.bf16.mxu0 0
    %977 = vmatpush1.bf16.msra.mxu0 %v686
    %978 = vmatprep.subr.bf16.mxu0 0
    %979 = vmatpush2.bf16.msra.mxu0 %v731
    %980 = vmatprep.subr.bf16.mxu0 0
    %981 = vmatpush2.bf16.msra.mxu0 %v728
    %982 = vmatprep.subr.bf16.mxu0 0
    %983 = vmatpush2.bf16.msra.mxu0 %v725
    %984 = vmatprep.subr.bf16.mxu0 0
    %985 = vmatpush2.bf16.msra.mxu0 %v722
    %986 = vmatprep.subr.bf16.mxu0 0
    %987 = vmatpush2.bf16.msra.mxu0 %v719
    %988 = vmatprep.subr.bf16.mxu0 0
    %989 = vmatpush2.bf16.msra.mxu0 %v716
    %990 = vmatprep.subr.bf16.mxu0 0
    %991 = vmatpush2.bf16.msra.mxu0 %v713
    %992 = vmatprep.subr.bf16.mxu0 0
    %993 = vmatpush2.bf16.msra.mxu0 %v710
    %994 = vmatprep.mubr.bf16.mxu0 %v216
    %995 = vmatmul.mubr.bf16.gmra.mxu0 %v215
    %v996 = vpop.f32.mrf.mxu0
    %v997 = vadd.f32 %v360, %v996
    %v998 = vpop.f32.mrf.mxu0
    %v999 = vpop.f32.mrf.mxu0
    %v1000 = vadd.f32 %v360, %v999
    %v1001 = vpop.f32.mrf.mxu0
    %1002 = vdwg.mxu0
    %1003 = vmatprep.subr.bf16.mxu0 0
    %1004 = vmatpush1.bf16.msra.mxu0 %v755
    %1005 = vmatprep.subr.bf16.mxu0 0
    %1006 = vmatpush1.bf16.msra.mxu0 %v752
    %1007 = vmatprep.subr.bf16.mxu0 0
    %1008 = vmatpush1.bf16.msra.mxu0 %v749
    %1009 = vmatprep.subr.bf16.mxu0 0
    %1010 = vmatpush1.bf16.msra.mxu0 %v746
    %1011 = vmatprep.subr.bf16.mxu0 0
    %1012 = vmatpush1.bf16.msra.mxu0 %v743
    %1013 = vmatprep.subr.bf16.mxu0 0
    %1014 = vmatpush1.bf16.msra.mxu0 %v740
    %1015 = vmatprep.subr.bf16.mxu0 0
    %1016 = vmatpush1.bf16.msra.mxu0 %v737
    %1017 = vmatprep.subr.bf16.mxu0 0
    %1018 = vmatpush1.bf16.msra.mxu0 %v734
    %1019 = vmatprep.subr.bf16.mxu0 0
    %1020 = vmatpush2.bf16.msra.mxu0 %v779
    %1021 = vmatprep.subr.bf16.mxu0 0
    %1022 = vmatpush2.bf16.msra.mxu0 %v776
    %1023 = vmatprep.subr.bf16.mxu0 0
    %1024 = vmatpush2.bf16.msra.mxu0 %v773
    %1025 = vmatprep.subr.bf16.mxu0 0
    %1026 = vmatpush2.bf16.msra.mxu0 %v770
    %1027 = vmatprep.subr.bf16.mxu0 0
    %1028 = vmatpush2.bf16.msra.mxu0 %v767
    %1029 = vmatprep.subr.bf16.mxu0 0
    %1030 = vmatpush2.bf16.msra.mxu0 %v764
    %1031 = vmatprep.subr.bf16.mxu0 0
    %1032 = vmatpush2.bf16.msra.mxu0 %v761
    %1033 = vmatprep.subr.bf16.mxu0 0
    %1034 = vmatpush2.bf16.msra.mxu0 %v758
    %1035 = vmatprep.mubr.bf16.mxu0 %v218
    %1036 = vmatmul.mubr.bf16.gmra.mxu0 %v217
    %v1037 = vpop.f32.mrf.mxu0
    %v1038 = vadd.f32 %v997, %v1037
    %v1039 = vpop.f32.mrf.mxu0
    %v1040 = vpop.f32.mrf.mxu0
    %v1041 = vadd.f32 %v1000, %v1040
    %v1042 = vpop.f32.mrf.mxu0
    %1043 = vdwg.mxu0
    %v1044 = vmax.f32 %v954, 0.0
    %v1045 = vmax.f32 %v956, 0.0
    %v1046 = vmax.f32 %v1038, 0.0
    %v1047 = vmax.f32 %v958, 0.0
    %v1048 = vmax.f32 %v960, 0.0
    %v1049 = vmax.f32 %v1041, 0.0
    %v1050 = vpack.c.bf16 %v1047, %v1044
    %v1051 = vpack.c.bf16 %v1048, %v1045
    %v1052 = vpack.c.bf16 %v1049, %v1046
    %v1053 = vld [vmem:[#allocation6] sm:$0xf]
    %v1054 = vld [vmem:[#allocation6 + $0x4] sm:$0xf]
    %v1055 = vld [vmem:[#allocation6 + $0x8] sm:$0xf]
    %v1056 = vld [vmem:[#allocation6 + $0xc] sm:$0xf]
    %v1057 = vld [vmem:[#allocation6 + $0x10] sm:$0xf]
    %v1058 = vld [vmem:[#allocation6 + $0x14] sm:$0xf]
    %v1059 = vld [vmem:[#allocation6 + $0x18] sm:$0xf]
    %v1060 = vld [vmem:[#allocation6 + $0x1c] sm:$0xf]
    %v1061 = vld [vmem:[#allocation6 + $0x20] sm:$0xf]
    %v1062 = vld [vmem:[#allocation6 + $0x24] sm:$0xf]
    %v1063 = vld [vmem:[#allocation6 + $0x28] sm:$0xf]
    %v1064 = vld [vmem:[#allocation6 + $0x2c] sm:$0xf]
    %v1065 = vld [vmem:[#allocation6 + $0x30] sm:$0xf]
    %v1066 = vld [vmem:[#allocation6 + $0x34] sm:$0xf]
    %v1067 = vld [vmem:[#allocation6 + $0x38] sm:$0xf]
    %v1068 = vld [vmem:[#allocation6 + $0x3c] sm:$0xf]
    %v1069 = vld [vmem:[#allocation6 + $0x40] sm:$0xf]
    %v1070 = vld [vmem:[#allocation6 + $0x44] sm:$0xf]
    %v1071 = vld [vmem:[#allocation6 + $0x48] sm:$0xf]
    %v1072 = vld [vmem:[#allocation6 + $0x4c] sm:$0xf]
    %v1073 = vld [vmem:[#allocation6 + $0x50] sm:$0xf]
    %v1074 = vld [vmem:[#allocation6 + $0x54] sm:$0xf]
    %v1075 = vld [vmem:[#allocation6 + $0x58] sm:$0xf]
    %v1076 = vld [vmem:[#allocation6 + $0x5c] sm:$0xf]
    %v1077 = vld [vmem:[#allocation6 + $0x60] sm:$0xf]
    %v1078 = vld [vmem:[#allocation6 + $0x64] sm:$0xf]
    %v1079 = vld [vmem:[#allocation6 + $0x68] sm:$0xf]
    %v1080 = vld [vmem:[#allocation6 + $0x6c] sm:$0xf]
    %v1081 = vld [vmem:[#allocation6 + $0x70] sm:$0xf]
    %v1082 = vld [vmem:[#allocation6 + $0x74] sm:$0xf]
    %v1083 = vld [vmem:[#allocation6 + $0x78] sm:$0xf]
    %v1084 = vld [vmem:[#allocation6 + $0x7c] sm:$0xf]
    %v1085 = vld [vmem:[#allocation6 + $0x80] sm:$0xf]
    %v1086 = vld [vmem:[#allocation6 + $0x84] sm:$0xf]
    %v1087 = vld [vmem:[#allocation6 + $0x88] sm:$0xf]
    %v1088 = vld [vmem:[#allocation6 + $0x8c] sm:$0xf]
    %v1089 = vld [vmem:[#allocation6 + $0x90] sm:$0xf]
    %v1090 = vld [vmem:[#allocation6 + $0x94] sm:$0xf]
    %v1091 = vld [vmem:[#allocation6 + $0x98] sm:$0xf]
    %v1092 = vld [vmem:[#allocation6 + $0x9c] sm:$0xf]
    %v1093 = vld [vmem:[#allocation6 + $0xa0] sm:$0xf]
    %v1094 = vld [vmem:[#allocation6 + $0xa4] sm:$0xf]
    %v1095 = vld [vmem:[#allocation6 + $0xa8] sm:$0xf]
    %v1096 = vld [vmem:[#allocation6 + $0xac] sm:$0xf]
    %v1097 = vld [vmem:[#allocation6 + $0xb0] sm:$0xf]
    %v1098 = vld [vmem:[#allocation6 + $0xb4] sm:$0xf]
    %v1099 = vld [vmem:[#allocation6 + $0xb8] sm:$0xf]
    %v1100 = vld [vmem:[#allocation6 + $0xbc] sm:$0xf]
    %v1101 = vld [vmem:[%s6] sm:$0x1]
    %v1103 = vlaneseq
    %v1104 = vshrl.u32 %v1103, 7
    %v1105 = vsub.s32 0, %v1104
    %v1106 = vrot.slane %v1101, %v1105
    %v1156 = vunpack.c.l.b16 %v1053
    %v1157 = vunpack.c.l.b16 %v1054
    %v1158 = vunpack.c.l.b16 %v1055
    %v1159 = vunpack.c.l.b16 %v1056
    %v1160 = vunpack.c.l.b16 %v1057
    %v1161 = vunpack.c.l.b16 %v1058
    %v1162 = vunpack.c.l.b16 %v1059
    %v1163 = vunpack.c.l.b16 %v1060
    %v1164 = vunpack.c.l.b16 %v1061
    %v1165 = vunpack.c.l.b16 %v1062
    %v1166 = vunpack.c.l.b16 %v1063
    %v1167 = vunpack.c.l.b16 %v1064
    %v1168 = vunpack.c.l.b16 %v1065
    %v1169 = vunpack.c.l.b16 %v1066
    %v1170 = vunpack.c.l.b16 %v1067
    %v1171 = vunpack.c.l.b16 %v1068
    %v1172 = vunpack.c.l.b16 %v1069
    %v1173 = vunpack.c.l.b16 %v1070
    %v1174 = vunpack.c.l.b16 %v1071
    %v1175 = vunpack.c.l.b16 %v1072
    %v1176 = vunpack.c.l.b16 %v1073
    %v1177 = vunpack.c.l.b16 %v1074
    %v1178 = vunpack.c.l.b16 %v1075
    %v1179 = vunpack.c.l.b16 %v1076
    %v1180 = vunpack.c.l.b16 %v1077
    %v1181 = vunpack.c.l.b16 %v1078
    %v1182 = vunpack.c.l.b16 %v1079
    %v1183 = vunpack.c.l.b16 %v1080
    %v1184 = vunpack.c.l.b16 %v1081
    %v1185 = vunpack.c.l.b16 %v1082
    %v1186 = vunpack.c.l.b16 %v1083
    %v1187 = vunpack.c.l.b16 %v1084
    %v1188 = vunpack.c.l.b16 %v1085
    %v1189 = vunpack.c.l.b16 %v1086
    %v1190 = vunpack.c.l.b16 %v1087
    %v1191 = vunpack.c.l.b16 %v1088
    %v1192 = vunpack.c.l.b16 %v1089
    %v1193 = vunpack.c.l.b16 %v1090
    %v1194 = vunpack.c.l.b16 %v1091
    %v1195 = vunpack.c.l.b16 %v1092
    %v1196 = vunpack.c.l.b16 %v1093
    %v1197 = vunpack.c.l.b16 %v1094
    %v1198 = vunpack.c.l.b16 %v1095
    %v1199 = vunpack.c.l.b16 %v1096
    %v1200 = vunpack.c.l.b16 %v1097
    %v1201 = vunpack.c.l.b16 %v1098
    %v1202 = vunpack.c.l.b16 %v1099
    %v1203 = vunpack.c.l.b16 %v1100
    %v1204 = vpack.c.b16 %v1157, %v1156
    %v1205 = vpack.c.b16 %v1159, %v1158
    %v1206 = vpack.c.b16 %v1161, %v1160
    %v1207 = vpack.c.b16 %v1163, %v1162
    %v1208 = vpack.c.b16 %v1165, %v1164
    %v1209 = vpack.c.b16 %v1167, %v1166
    %v1210 = vpack.c.b16 %v1169, %v1168
    %v1211 = vpack.c.b16 %v1171, %v1170
    %v1212 = vpack.c.b16 %v1173, %v1172
    %v1213 = vpack.c.b16 %v1175, %v1174
    %v1214 = vpack.c.b16 %v1177, %v1176
    %v1215 = vpack.c.b16 %v1179, %v1178
    %v1216 = vpack.c.b16 %v1181, %v1180
    %v1217 = vpack.c.b16 %v1183, %v1182
    %v1218 = vpack.c.b16 %v1185, %v1184
    %v1219 = vpack.c.b16 %v1187, %v1186
    %v1220 = vpack.c.b16 %v1189, %v1188
    %v1221 = vpack.c.b16 %v1191, %v1190
    %v1222 = vpack.c.b16 %v1193, %v1192
    %v1223 = vpack.c.b16 %v1195, %v1194
    %v1224 = vpack.c.b16 %v1197, %v1196
    %v1225 = vpack.c.b16 %v1199, %v1198
    %v1226 = vpack.c.b16 %v1201, %v1200
    %v1227 = vpack.c.b16 %v1203, %v1202
    %1252 = vmatprep.subr.bf16.mxu0 0
    %1253 = vmatpush1.bf16.msra.mxu0 %v1211
    %1254 = vmatprep.subr.bf16.mxu0 0
    %1255 = vmatpush1.bf16.msra.mxu0 %v1210
    %1256 = vmatprep.subr.bf16.mxu0 0
    %1257 = vmatpush1.bf16.msra.mxu0 %v1209
    %1258 = vmatprep.subr.bf16.mxu0 0
    %1259 = vmatpush1.bf16.msra.mxu0 %v1208
    %1260 = vmatprep.subr.bf16.mxu0 0
    %1261 = vmatpush1.bf16.msra.mxu0 %v1207
    %1262 = vmatprep.subr.bf16.mxu0 0
    %1263 = vmatpush1.bf16.msra.mxu0 %v1206
    %1264 = vmatprep.subr.bf16.mxu0 0
    %1265 = vmatpush1.bf16.msra.mxu0 %v1205
    %1266 = vmatprep.subr.bf16.mxu0 0
    %1267 = vmatpush1.bf16.msra.mxu0 %v1204
    %1268 = vmatprep.subr.bf16.mxu0 0
    %1269 = vmatpush2.bf16.msra.mxu0 %v1219
    %1270 = vmatprep.subr.bf16.mxu0 0
    %1271 = vmatpush2.bf16.msra.mxu0 %v1218
    %1272 = vmatprep.subr.bf16.mxu0 0
    %1273 = vmatpush2.bf16.msra.mxu0 %v1217
    %1274 = vmatprep.subr.bf16.mxu0 0
    %1275 = vmatpush2.bf16.msra.mxu0 %v1216
    %1276 = vmatprep.subr.bf16.mxu0 0
    %1277 = vmatpush2.bf16.msra.mxu0 %v1215
    %1278 = vmatprep.subr.bf16.mxu0 0
    %1279 = vmatpush2.bf16.msra.mxu0 %v1214
    %1280 = vmatprep.subr.bf16.mxu0 0
    %1281 = vmatpush2.bf16.msra.mxu0 %v1213
    %1282 = vmatprep.subr.bf16.mxu0 0
    %1283 = vmatpush2.bf16.msra.mxu0 %v1212
    %1284 = vmatprep.mubr.bf16.mxu0 %v1051
    %1285 = vmatmul.mubr.bf16.gmra.mxu0 %v1050
    %v1286 = vpop.f32.mrf.mxu0
    %v1287 = vadd.f32 %v1106, %v1286
    %v1288 = vpop.f32.mrf.mxu0
    %v1289 = vpop.f32.mrf.mxu0
    %v1290 = vadd.f32 %v1106, %v1289
    %v1291 = vpop.f32.mrf.mxu0
    %1292 = vdwg.mxu0
    %1293 = vmatprep.subr.bf16.mxu0 0
    %1294 = vmatpush1.bf16.msra.mxu0 %v1227
    %1295 = vmatprep.subr.bf16.mxu0 0
    %1296 = vmatpush1.bf16.msra.mxu0 %v1226
    %1297 = vmatprep.subr.bf16.mxu0 0
    %1298 = vmatpush1.bf16.msra.mxu0 %v1225
    %1299 = vmatprep.subr.bf16.mxu0 0
    %1300 = vmatpush1.bf16.msra.mxu0 %v1224
    %1301 = vmatprep.subr.bf16.mxu0 0
    %1302 = vmatpush1.bf16.msra.mxu0 %v1223
    %1303 = vmatprep.subr.bf16.mxu0 0
    %1304 = vmatpush1.bf16.msra.mxu0 %v1222
    %1305 = vmatprep.subr.bf16.mxu0 0
    %1306 = vmatpush1.bf16.msra.mxu0 %v1221
    %1307 = vmatprep.subr.bf16.mxu0 0
    %1308 = vmatpush1.bf16.msra.mxu0 %v1220
    %1309 = vmatprep.subr.bf16.mxu0 0
    %1310 = vmatpush2.bf16.msra.mxu0 0
    %1311 = vmatprep.subr.bf16.mxu0 0
    %1312 = vmatpush2.bf16.msra.mxu0 0
    %1313 = vmatprep.subr.bf16.mxu0 0
    %1314 = vmatpush2.bf16.msra.mxu0 0
    %1315 = vmatprep.subr.bf16.mxu0 0
    %1316 = vmatpush2.bf16.msra.mxu0 0
    %1317 = vmatprep.subr.bf16.mxu0 0
    %1318 = vmatpush2.bf16.msra.mxu0 0
    %1319 = vmatprep.subr.bf16.mxu0 0
    %1320 = vmatpush2.bf16.msra.mxu0 0
    %1321 = vmatprep.subr.bf16.mxu0 0
    %1322 = vmatpush2.bf16.msra.mxu0 0
    %1323 = vmatprep.subr.bf16.mxu0 0
    %1324 = vmatpush2.bf16.msra.mxu0 0
    %1325 = vmatprep.mubr.bf16.mxu0 0
    %1326 = vmatmul.mubr.bf16.gmra.mxu0 %v1052
    %v1327 = vpop.f32.mrf.mxu0
    %v1328 = vadd.f32 %v1287, %v1327
    %v1329 = vpop.f32.mrf.mxu0
    %v1330 = vpop.f32.mrf.mxu0
    %v1331 = vadd.f32 %v1290, %v1330
    %v1332 = vpop.f32.mrf.mxu0
    %1333 = vdwg.mxu0
    %v1334 = vtanh.pop %v1328
    %v1335 = vtanh.pop %v1331
    %1336 = vst [vmem:[%s7] sm:$0xff] %v1334
    %1337 = vst [vmem:[%s7 + $0x8] sm:$0xff] %v1335
    // Predicated region
    $region42: #{actor_forward.1} parent=1 // pred_check
      _
    $region43: #{actor_forward.1} parent=1 // pred_check_branch
      %1339 = sbr.rel (0) target = $region45
    $region44: #{actor_forward.1} parent=1 // pred_region
      _
    $region45: #{actor_forward.1} parent=1 // pred_fallthru
      _
    // Predicated region
    $region46: #{actor_forward.1} parent=1 // pred_check
      _
    $region47: #{actor_forward.1} parent=1 // pred_check_branch
      %1341 = sbr.rel (0) target = $region49
    $region48: #{actor_forward.1} parent=1 // pred_region
      _
    $region49: #{actor_forward.1} parent=1 // pred_fallthru
      _
    %1342 = vsyncpa [#allocation3], 1
    %1343 = vsyncpa [#allocation5], 1

</llo_original>
